<compile_context>
chip_gen: v7x
topology: tpu7x:2x2x1
jax: 0.10.0
libtpu: 0.0.40
codegen_flags: <defaults>
</compile_context>

<pallas_src>
import math
from functools import partial

import jax
import jax.numpy as jnp
from jax.experimental import pallas as pl
from jax.experimental.pallas import tpu as pltpu

_MIB = 1024 * 1024


def make_pe(max_len: int, d_model: int, dtype=jnp.float32) -> jnp.ndarray:
    """Sinusoidal positional-encoding buffer (as in __init__), in model dtype.

    Built once at init (dtype conversion hoisted out of the per-call path).
    Handles odd d_model (cos columns truncated to floor(D/2)).
    """
    position = jnp.arange(0, max_len, dtype=jnp.float32)[:, None]           # (L, 1)
    div_term = jnp.exp(
        jnp.arange(0, d_model, 2, dtype=jnp.float32) * (-math.log(10000.0) / d_model)
    )                                                                        # (ceil(D/2),)
    angles = position * div_term                                             # (L, ceil(D/2))
    pe = jnp.zeros((max_len, d_model), dtype=jnp.float32)
    pe = pe.at[:, 0::2].set(jnp.sin(angles))
    pe = pe.at[:, 1::2].set(jnp.cos(angles)[:, : d_model // 2])
    return pe.astype(dtype)                                                  # (L, D)


def _vmem_capacity_bytes() -> int:
    """Per-TensorCore VMEM capacity; conservative fallback = v7x's 64 MiB."""
    try:
        return int(pltpu.get_tpu_info().vmem_capacity_bytes)
    except Exception:
        return 64 * _MIB


def _pos_enc_kernel_tiled(x_ref, pe_ref, o_ref):
    # x_ref: (ts, B, D); pe_ref: (ts, D) rows for this tile.
    # out[s, b, d] = x[s, b, d] + pe[s, d]  (sublane broadcast over batch).
    o_ref[...] = x_ref[...] + pe_ref[...][:, None, :]
    # TODO(synk): dropout is p=0 in the module -> identity; not implemented.


def _pos_enc_kernel_resident(seq_tile, x_ref, pe_ref, o_ref):
    # pe_ref: (S_pad, D) resident across the whole grid (fetched once);
    # slice out this step's rows instead of re-DMAing pe per step.
    row0 = pl.multiple_of(pl.program_id(0) * seq_tile, 8)
    pe_rows = pe_ref[pl.ds(row0, seq_tile), :]                               # (ts, D)
    o_ref[...] = x_ref[...] + pe_rows[:, None, :]


def _choose_seq_tile(S: int, B: int, D: int, itemsize: int, vmem_budget: int) -> int:
    """Pick a seq tile: single block for tiny inputs, otherwise ~8 MiB of x per
    step, an even number (>=2) of steps, a multiple of 8, within VMEM budget."""
    row_bytes = B * D * itemsize                 # one seq row of x / out
    pe_row_bytes = D * itemsize
    total_bytes = S * (row_bytes + pe_row_bytes)

    # Tiny input: one block — per-step pipeline overhead would dominate.
    if total_bytes <= 4 * _MIB:
        return S

    # Per-row working-set cost: 2x double-buffered x-in + out, double-buffered
    # pe tile, plus ~1 x-tile of headroom for the in-kernel sublane broadcast.
    per_row = 5 * row_bytes + 2 * pe_row_bytes
    rows_by_vmem = max(8, (vmem_budget // per_row) // 8 * 8)
    # (If a single 8-row tile still exceeds the budget — enormous B*D — the
    #  batch dim would also need tiling; out of scope for this module's sizes.)

    # ~8 MiB of x per step, rounded to an even step count (>= 2) so the
    # "parallel" seq axis shards across both v7x TensorCores.
    steps = max(2, pl.cdiv(S * row_bytes, 8 * _MIB))
    steps += steps & 1
    tile = pl.cdiv(S, steps)
    tile = pl.cdiv(tile, 8) * 8                  # sublane-aligned pe blocks
    tile = min(tile, rows_by_vmem)
    if tile >= S:
        return S
    return int(tile)


def positional_encoding(x: jnp.ndarray, pe: jnp.ndarray, *,
                        seq_tile: int | None = None,
                        donate_x: bool = False) -> jnp.ndarray:
    """x: (S, B, D); pe: (max_len, D) or (max_len, 1, D). Returns x + pe[:S]."""
    S, B, D = x.shape
    if pe.ndim == 3:                              # accept the PyTorch buffer shape
        pe = jnp.squeeze(pe, axis=1)
    max_len, D_pe = pe.shape
    assert D_pe == D, "pe d_model mismatch"
    assert S <= max_len, "seq_len exceeds positional-encoding max_len"

    pe = pe[:S]
    if pe.dtype != x.dtype:                       # normally hoisted: make_pe builds in model dtype
        pe = pe.astype(x.dtype)

    itemsize = jnp.dtype(x.dtype).itemsize
    vmem_cap = _vmem_capacity_bytes()
    vmem_budget = int(0.70 * vmem_cap)

    if seq_tile is None:
        seq_tile = _choose_seq_tile(S, B, D, itemsize, vmem_budget)
    seq_tile = int(min(seq_tile, S))
    grid_n = pl.cdiv(S, seq_tile)                 # ragged last block handled by Pallas

    x_tile_bytes = seq_tile * B * D * itemsize
    pe_resident_bytes = 2 * grid_n * seq_tile * D * itemsize   # conservative (dbl-buffered)

    # Keep pe resident (fetched once, sliced per step) when it is small and the
    # grid has several steps; otherwise stream matching pe tiles (still only a
    # single pass over pe in total, 1/B of the x read stream).
    use_resident_pe = (
        grid_n > 1
        and seq_tile % 8 == 0
        and pe_resident_bytes <= 4 * _MIB
        and 5 * x_tile_bytes + pe_resident_bytes <= vmem_budget
    )

    if use_resident_pe:
        s_pad = grid_n * seq_tile
        if s_pad != S:
            pe = jnp.pad(pe, ((0, s_pad - S), (0, 0)))
        kernel = partial(_pos_enc_kernel_resident, seq_tile)
        pe_spec = pl.BlockSpec((s_pad, D), lambda i: (0, 0))
        pe_vmem = pe_resident_bytes
    else:
        kernel = _pos_enc_kernel_tiled
        pe_spec = pl.BlockSpec((seq_tile, D), lambda i: (i, 0))
        pe_vmem = 2 * seq_tile * D * itemsize

    # Scoped-VMEM limit: double-buffered in/out + pe + broadcast-temp headroom.
    needed = 4 * x_tile_bytes + x_tile_bytes + pe_vmem
    vmem_limit = int(min(max(needed + 2 * _MIB, 32 * _MIB), int(0.85 * vmem_cap)))

    return pl.pallas_call(
        kernel,
        out_shape=jax.ShapeDtypeStruct((S, B, D), x.dtype),
        grid_spec=pltpu.PrefetchScalarGridSpec(
            num_scalar_prefetch=0,
            grid=(grid_n,),
            in_specs=[
                # x: D on lanes (full, lane-dense; pad D in production if it is
                # not a multiple of 128), B on sublanes (full), seq tiled.
                pl.BlockSpec((seq_tile, B, D), lambda i: (i, 0, 0)),
                pe_spec,
            ],
            out_specs=pl.BlockSpec((seq_tile, B, D), lambda i: (i, 0, 0)),
        ),
        input_output_aliases={0: 0} if donate_x else {},
        compiler_params=pltpu.CompilerParams(
            dimension_semantics=("parallel",),   # shards seq steps across v7x's two TCs
            vmem_limit_bytes=vmem_limit,
        ),
    )(x, pe)


if __name__ == "__main__":
    # Lane/sublane-dense small shapes: D multiple of 128, B multiple of 8.
    # Total x + pe is ~288 KiB, so the tiler picks a single full-array block.
    SEQ, BATCH, D_MODEL, MAX_LEN = 64, 8, 128, 128

    key = jax.random.PRNGKey(0)
    x = jax.random.normal(key, (SEQ, BATCH, D_MODEL), dtype=jnp.float32)

    pe = make_pe(MAX_LEN, D_MODEL, dtype=x.dtype)   # buffer built once, model dtype

    out = jax.block_until_ready(positional_encoding(x, pe))

    # Reference: out[s, b, d] = x[s, b, d] + pe[s, d] (dropout p=0 is identity).
    ref = x + pe[:SEQ][:, None, :]
    assert out.shape == x.shape and out.dtype == x.dtype
    assert jnp.allclose(out, ref, atol=1e-6), "mismatch vs reference"

    print("KERNEL_OK")
</pallas_src>

<mosaic_0001>
module attributes {stable_mosaic.version = 11 : i64} {
  func.func @_pos_enc_kernel_tiled(%arg0: i32, %arg1: memref<64x8x128xf32, #tpu.memory_space<vmem>>, %arg2: memref<64x128xf32, #tpu.memory_space<vmem>>, %arg3: memref<64x8x128xf32, #tpu.memory_space<vmem>>) attributes {dimension_semantics = [#tpu.dimension_semantics<parallel>], iteration_bounds = array<i64: 1>, scalar_prefetch = 0 : i64, scratch_operands = 0 : i64, tpu.core_type = #tpu.core_type<tc>, window_params = [{transform_indices = @transform_0, window_bounds = array<i64: 64, 8, 128>}, {transform_indices = @transform_1, window_bounds = array<i64: 64, 128>}, {transform_indices = @transform_2, window_bounds = array<i64: 64, 8, 128>}]} {
    %c0 = arith.constant 0 : index
    %c0_0 = arith.constant 0 : index
    %c0_1 = arith.constant 0 : index
    %0 = vector.load %arg1[%c0, %c0_0, %c0_1] : memref<64x8x128xf32, #tpu.memory_space<vmem>>, vector<64x8x128xf32>
    %c0_2 = arith.constant 0 : index
    %c0_3 = arith.constant 0 : index
    %1 = vector.load %arg2[%c0_2, %c0_3] : memref<64x128xf32, #tpu.memory_space<vmem>>, vector<64x128xf32>
    %2 = vector.shape_cast %1 : vector<64x128xf32> to vector<64x1x128xf32>
    %3 = vector.broadcast %2 : vector<64x1x128xf32> to vector<64x8x128xf32>
    %4 = arith.addf %0, %3 : vector<64x8x128xf32>
    %c0_4 = arith.constant 0 : index
    %c0_5 = arith.constant 0 : index
    %c0_6 = arith.constant 0 : index
    %5 = vector.load %arg3[%c0_4, %c0_5, %c0_6] : memref<64x8x128xf32, #tpu.memory_space<vmem>>, vector<64x8x128xf32>
    tpu.vector_store %arg3[%c0_4, %c0_5, %c0_6], %4 {strides = array<i32>} : memref<64x8x128xf32, #tpu.memory_space<vmem>>, vector<64x8x128xf32>,
    return
  }
  func.func @transform_0(%arg0: i32) -> (i32, i32, i32) {
    %c0_i32 = arith.constant 0 : i32
    %c0_i32_0 = arith.constant 0 : i32
    %c0_i32_1 = arith.constant 0 : i32
    return %arg0, %c0_i32, %c0_i32_0 : i32, i32, i32
  }
  func.func @transform_1(%arg0: i32) -> (i32, i32) {
    %c0_i32 = arith.constant 0 : i32
    %c0_i32_0 = arith.constant 0 : i32
    return %arg0, %c0_i32 : i32, i32
  }
  func.func @transform_2(%arg0: i32) -> (i32, i32, i32) {
    %c0_i32 = arith.constant 0 : i32
    %c0_i32_0 = arith.constant 0 : i32
    %c0_i32_1 = arith.constant 0 : i32
    return %arg0, %c0_i32, %c0_i32_0 : i32, i32, i32
  }
}

</mosaic_0001>

<llo_original>
// kernel: tpu_custom_call.1
$region0: #{tpu_custom_call.1}
  #allocation0 [shape = 'u32[]', space=smem, size = 0x4, offset = 0x4, fixed_abs, tag = 'smem constant byte address 0x4 - core index']
  #allocation1 [shape = 'u32[144,128]{1,0:T(1,128)}', space=vmem, size = 0x12000, scoped, tag = 'internal scratch']
  %s0 = inlined_call_operand.hbm [shape: f32[64,8,128], index: 0, kind: input, shape index: {}]
  %s1 = inlined_call_operand.hbm [shape: f32[64,128], index: 1, kind: input, shape index: {}]
  %s2 = inlined_call_operand.hbm [shape: f32[64,8,128], index: 2, kind: output, shape index: {}]
  %s3 = sld [smem:[#allocation0]]
  $region26: #{tpu_custom_call.1} parent=0
    _
  %s5 = ssub.s32 1, %s3
  %s6 = scalar_select 0, %s5, %s3
  $region1: #{tpu_custom_call.1} parent=0
    #allocation2 [shape = 'u8[262144]{0}', space=vmem, size = 0x40000, scoped, tag = 'input window, operand 0, single buffered']
    #allocation3 [shape = 's32[1]{0}', space=sflag, size = 0x4, scoped, tag = 'scoped memory for tpu_custom_call.1']
    #allocation4 [shape = 's32[1]{0}', space=sflag, size = 0x4, scoped, tag = 'scoped memory for tpu_custom_call.1']
    #allocation5 [shape = 'u8[32768]{0}', space=vmem, size = 0x8000, scoped, tag = 'input window, operand 1, single buffered']
    #allocation6 [shape = 's32[1]{0}', space=sflag, size = 0x4, scoped, tag = 'scoped memory for tpu_custom_call.1']
    #allocation7 [shape = 'u8[262144]{0}', space=vmem, size = 0x40000, scoped, tag = 'output window, operand 0, single buffered']
    %7 = vsyncpa [#allocation3], 0
    %8 = vsyncpa [#allocation6], 0
    %9 = vsyncpa [#allocation4], 0
    // Predicated region
    $region2: #{tpu_custom_call.1} parent=1 // pred_check
      _
    $region3: #{tpu_custom_call.1} parent=1 // pred_check_branch
      %11 = sbr.rel (0) target = $region5
    $region4: #{tpu_custom_call.1} parent=1 // pred_region
      %s13 = ssub.s32 8192, 8192
      %14 = vsyncadd [#allocation3], %s13
      %s15 = sshll.u32 [#allocation2], 4
      %s16 = int_to_ptr.vmem [resolvable:$true] %s15
      %21 = dma.hbm_to_vmem [thread:$0]  %s0, 8192, %s16, [#allocation3], 128, 128, 8
    $region5: #{tpu_custom_call.1} parent=1 // pred_fallthru
      _
    // Predicated region
    $region6: #{tpu_custom_call.1} parent=1 // pred_check
      _
    $region7: #{tpu_custom_call.1} parent=1 // pred_check_branch
      %23 = sbr.rel (0) target = $region9
    $region8: #{tpu_custom_call.1} parent=1 // pred_region
      %s25 = ssub.s32 1024, 1024
      %26 = vsyncadd [#allocation6], %s25
      %s27 = sshll.u32 [#allocation5], 4
      %s28 = int_to_ptr.vmem [resolvable:$true] %s27
      %33 = dma.hbm_to_vmem [thread:$0]  %s1, 1024, %s28, [#allocation6], 128, 128, 8
    $region9: #{tpu_custom_call.1} parent=1 // pred_fallthru
      _
    // Predicated region
    $region10: #{tpu_custom_call.1} parent=1 // pred_check
      _
    $region11: #{tpu_custom_call.1} parent=1 // pred_check_branch
      %35 = sbr.rel (0) target = $region13
    $region12: #{tpu_custom_call.1} parent=1 // pred_region
      %36 = dma.done [#allocation3], 8192
    $region13: #{tpu_custom_call.1} parent=1 // pred_fallthru
      _
    // Predicated region
    $region14: #{tpu_custom_call.1} parent=1 // pred_check
      _
    $region15: #{tpu_custom_call.1} parent=1 // pred_check_branch
      %38 = sbr.rel (0) target = $region17
    $region16: #{tpu_custom_call.1} parent=1 // pred_region
      %39 = dma.done [#allocation6], 1024
    $region17: #{tpu_custom_call.1} parent=1 // pred_fallthru
      _
    %v40 = vld [vmem:[#allocation2] sm:$0xff]
    %v41 = vld [vmem:[#allocation2 + $0x8] sm:$0xff]
    %v42 = vld [vmem:[#allocation2 + $0x10] sm:$0xff]
    %v43 = vld [vmem:[#allocation2 + $0x18] sm:$0xff]
    %v44 = vld [vmem:[#allocation2 + $0x20] sm:$0xff]
    %v45 = vld [vmem:[#allocation2 + $0x28] sm:$0xff]
    %v46 = vld [vmem:[#allocation2 + $0x30] sm:$0xff]
    %v47 = vld [vmem:[#allocation2 + $0x38] sm:$0xff]
    %v48 = vld [vmem:[#allocation2 + $0x40] sm:$0xff]
    %v49 = vld [vmem:[#allocation2 + $0x48] sm:$0xff]
    %v50 = vld [vmem:[#allocation2 + $0x50] sm:$0xff]
    %v51 = vld [vmem:[#allocation2 + $0x58] sm:$0xff]
    %v52 = vld [vmem:[#allocation2 + $0x60] sm:$0xff]
    %v53 = vld [vmem:[#allocation2 + $0x68] sm:$0xff]
    %v54 = vld [vmem:[#allocation2 + $0x70] sm:$0xff]
    %v55 = vld [vmem:[#allocation2 + $0x78] sm:$0xff]
    %v56 = vld [vmem:[#allocation2 + $0x80] sm:$0xff]
    %v57 = vld [vmem:[#allocation2 + $0x88] sm:$0xff]
    %v58 = vld [vmem:[#allocation2 + $0x90] sm:$0xff]
    %v59 = vld [vmem:[#allocation2 + $0x98] sm:$0xff]
    %v60 = vld [vmem:[#allocation2 + $0xa0] sm:$0xff]
    %v61 = vld [vmem:[#allocation2 + $0xa8] sm:$0xff]
    %v62 = vld [vmem:[#allocation2 + $0xb0] sm:$0xff]
    %v63 = vld [vmem:[#allocation2 + $0xb8] sm:$0xff]
    %v64 = vld [vmem:[#allocation2 + $0xc0] sm:$0xff]
    %v65 = vld [vmem:[#allocation2 + $0xc8] sm:$0xff]
    %v66 = vld [vmem:[#allocation2 + $0xd0] sm:$0xff]
    %v67 = vld [vmem:[#allocation2 + $0xd8] sm:$0xff]
    %v68 = vld [vmem:[#allocation2 + $0xe0] sm:$0xff]
    %v69 = vld [vmem:[#allocation2 + $0xe8] sm:$0xff]
    %v70 = vld [vmem:[#allocation2 + $0xf0] sm:$0xff]
    %v71 = vld [vmem:[#allocation2 + $0xf8] sm:$0xff]
    %v72 = vld [vmem:[#allocation2 + $0x100] sm:$0xff]
    %v73 = vld [vmem:[#allocation2 + $0x108] sm:$0xff]
    %v74 = vld [vmem:[#allocation2 + $0x110] sm:$0xff]
    %v75 = vld [vmem:[#allocation2 + $0x118] sm:$0xff]
    %v76 = vld [vmem:[#allocation2 + $0x120] sm:$0xff]
    %v77 = vld [vmem:[#allocation2 + $0x128] sm:$0xff]
    %v78 = vld [vmem:[#allocation2 + $0x130] sm:$0xff]
    %v79 = vld [vmem:[#allocation2 + $0x138] sm:$0xff]
    %v80 = vld [vmem:[#allocation2 + $0x140] sm:$0xff]
    %v81 = vld [vmem:[#allocation2 + $0x148] sm:$0xff]
    %v82 = vld [vmem:[#allocation2 + $0x150] sm:$0xff]
    %v83 = vld [vmem:[#allocation2 + $0x158] sm:$0xff]
    %v84 = vld [vmem:[#allocation2 + $0x160] sm:$0xff]
    %v85 = vld [vmem:[#allocation2 + $0x168] sm:$0xff]
    %v86 = vld [vmem:[#allocation2 + $0x170] sm:$0xff]
    %v87 = vld [vmem:[#allocation2 + $0x178] sm:$0xff]
    %v88 = vld [vmem:[#allocation2 + $0x180] sm:$0xff]
    %v89 = vld [vmem:[#allocation2 + $0x188] sm:$0xff]
    %v90 = vld [vmem:[#allocation2 + $0x190] sm:$0xff]
    %v91 = vld [vmem:[#allocation2 + $0x198] sm:$0xff]
    %v92 = vld [vmem:[#allocation2 + $0x1a0] sm:$0xff]
    %v93 = vld [vmem:[#allocation2 + $0x1a8] sm:$0xff]
    %v94 = vld [vmem:[#allocation2 + $0x1b0] sm:$0xff]
    %v95 = vld [vmem:[#allocation2 + $0x1b8] sm:$0xff]
    %v96 = vld [vmem:[#allocation2 + $0x1c0] sm:$0xff]
    %v97 = vld [vmem:[#allocation2 + $0x1c8] sm:$0xff]
    %v98 = vld [vmem:[#allocation2 + $0x1d0] sm:$0xff]
    %v99 = vld [vmem:[#allocation2 + $0x1d8] sm:$0xff]
    %v100 = vld [vmem:[#allocation2 + $0x1e0] sm:$0xff]
    %v101 = vld [vmem:[#allocation2 + $0x1e8] sm:$0xff]
    %v102 = vld [vmem:[#allocation2 + $0x1f0] sm:$0xff]
    %v103 = vld [vmem:[#allocation2 + $0x1f8] sm:$0xff]
    %v104 = vld [vmem:[#allocation5] sm:$0xff]
    %v105 = vld [vmem:[#allocation5 + $0x8] sm:$0xff]
    %v106 = vld [vmem:[#allocation5 + $0x10] sm:$0xff]
    %v107 = vld [vmem:[#allocation5 + $0x18] sm:$0xff]
    %v108 = vld [vmem:[#allocation5 + $0x20] sm:$0xff]
    %v109 = vld [vmem:[#allocation5 + $0x28] sm:$0xff]
    %v110 = vld [vmem:[#allocation5 + $0x30] sm:$0xff]
    %v111 = vld [vmem:[#allocation5 + $0x38] sm:$0xff]
    %v120 = vcombine.high %v104, %v104
    %v122 = vunpack.c.l.s4 1966171168
    %v123 = vunpack.c.0.s8 %v122
    %v124 = vlaneseq
    %v125 = vshrl.u32 %v124, 7
    %v126 = vsub.s32 %v123, %v125
    %v127 = vrot.slane %v104, %v126
    %v129 = vunpack.c.l.s4 1966171168
    %v130 = vunpack.c.0.s8 %v129
    %v131 = vlaneseq
    %v132 = vshrl.u32 %v131, 7
    %v133 = vsub.s32 %v130, %v132
    %v134 = vrot.slane %v120, %v133
    %v135 = vcombine.high %v127, %v127
    %v136 = vcombine.high %v134, %v134
    %v138 = vunpack.c.l.s4 1966171168
    %v139 = vunpack.c.0.s8 %v138
    %v140 = vlaneseq
    %v141 = vshrl.u32 %v140, 7
    %v142 = vsub.s32 %v139, %v141
    %v143 = vrot.slane %v127, %v142
    %v145 = vunpack.c.l.s4 1966171168
    %v146 = vunpack.c.0.s8 %v145
    %v147 = vlaneseq
    %v148 = vshrl.u32 %v147, 7
    %v149 = vsub.s32 %v146, %v148
    %v150 = vrot.slane %v134, %v149
    %v152 = vunpack.c.l.s4 1966171168
    %v153 = vunpack.c.0.s8 %v152
    %v154 = vlaneseq
    %v155 = vshrl.u32 %v154, 7
    %v156 = vsub.s32 %v153, %v155
    %v157 = vrot.slane %v135, %v156
    %v159 = vunpack.c.l.s4 1966171168
    %v160 = vunpack.c.0.s8 %v159
    %v161 = vlaneseq
    %v162 = vshrl.u32 %v161, 7
    %v163 = vsub.s32 %v160, %v162
    %v164 = vrot.slane %v136, %v163
    %v165 = vcombine.high %v143, %v143
    %v166 = vcombine.high %v150, %v150
    %v167 = vcombine.high %v157, %v157
    %v168 = vcombine.high %v164, %v164
    %v169 = vcombine.high %v105, %v105
    %v171 = vunpack.c.l.s4 1966171168
    %v172 = vunpack.c.0.s8 %v171
    %v173 = vlaneseq
    %v174 = vshrl.u32 %v173, 7
    %v175 = vsub.s32 %v172, %v174
    %v176 = vrot.slane %v105, %v175
    %v178 = vunpack.c.l.s4 1966171168
    %v179 = vunpack.c.0.s8 %v178
    %v180 = vlaneseq
    %v181 = vshrl.u32 %v180, 7
    %v182 = vsub.s32 %v179, %v181
    %v183 = vrot.slane %v169, %v182
    %v184 = vcombine.high %v176, %v176
    %v185 = vcombine.high %v183, %v183
    %v187 = vunpack.c.l.s4 1966171168
    %v188 = vunpack.c.0.s8 %v187
    %v189 = vlaneseq
    %v190 = vshrl.u32 %v189, 7
    %v191 = vsub.s32 %v188, %v190
    %v192 = vrot.slane %v176, %v191
    %v194 = vunpack.c.l.s4 1966171168
    %v195 = vunpack.c.0.s8 %v194
    %v196 = vlaneseq
    %v197 = vshrl.u32 %v196, 7
    %v198 = vsub.s32 %v195, %v197
    %v199 = vrot.slane %v183, %v198
    %v201 = vunpack.c.l.s4 1966171168
    %v202 = vunpack.c.0.s8 %v201
    %v203 = vlaneseq
    %v204 = vshrl.u32 %v203, 7
    %v205 = vsub.s32 %v202, %v204
    %v206 = vrot.slane %v184, %v205
    %v208 = vunpack.c.l.s4 1966171168
    %v209 = vunpack.c.0.s8 %v208
    %v210 = vlaneseq
    %v211 = vshrl.u32 %v210, 7
    %v212 = vsub.s32 %v209, %v211
    %v213 = vrot.slane %v185, %v212
    %v214 = vcombine.high %v192, %v192
    %v215 = vcombine.high %v199, %v199
    %v216 = vcombine.high %v206, %v206
    %v217 = vcombine.high %v213, %v213
    %v218 = vcombine.high %v106, %v106
    %v220 = vunpack.c.l.s4 1966171168
    %v221 = vunpack.c.0.s8 %v220
    %v222 = vlaneseq
    %v223 = vshrl.u32 %v222, 7
    %v224 = vsub.s32 %v221, %v223
    %v225 = vrot.slane %v106, %v224
    %v227 = vunpack.c.l.s4 1966171168
    %v228 = vunpack.c.0.s8 %v227
    %v229 = vlaneseq
    %v230 = vshrl.u32 %v229, 7
    %v231 = vsub.s32 %v228, %v230
    %v232 = vrot.slane %v218, %v231
    %v233 = vcombine.high %v225, %v225
    %v234 = vcombine.high %v232, %v232
    %v236 = vunpack.c.l.s4 1966171168
    %v237 = vunpack.c.0.s8 %v236
    %v238 = vlaneseq
    %v239 = vshrl.u32 %v238, 7
    %v240 = vsub.s32 %v237, %v239
    %v241 = vrot.slane %v225, %v240
    %v243 = vunpack.c.l.s4 1966171168
    %v244 = vunpack.c.0.s8 %v243
    %v245 = vlaneseq
    %v246 = vshrl.u32 %v245, 7
    %v247 = vsub.s32 %v244, %v246
    %v248 = vrot.slane %v232, %v247
    %v250 = vunpack.c.l.s4 1966171168
    %v251 = vunpack.c.0.s8 %v250
    %v252 = vlaneseq
    %v253 = vshrl.u32 %v252, 7
    %v254 = vsub.s32 %v251, %v253
    %v255 = vrot.slane %v233, %v254
    %v257 = vunpack.c.l.s4 1966171168
    %v258 = vunpack.c.0.s8 %v257
    %v259 = vlaneseq
    %v260 = vshrl.u32 %v259, 7
    %v261 = vsub.s32 %v258, %v260
    %v262 = vrot.slane %v234, %v261
    %v263 = vcombine.high %v241, %v241
    %v264 = vcombine.high %v248, %v248
    %v265 = vcombine.high %v255, %v255
    %v266 = vcombine.high %v262, %v262
    %v267 = vcombine.high %v107, %v107
    %v269 = vunpack.c.l.s4 1966171168
    %v270 = vunpack.c.0.s8 %v269
    %v271 = vlaneseq
    %v272 = vshrl.u32 %v271, 7
    %v273 = vsub.s32 %v270, %v272
    %v274 = vrot.slane %v107, %v273
    %v276 = vunpack.c.l.s4 1966171168
    %v277 = vunpack.c.0.s8 %v276
    %v278 = vlaneseq
    %v279 = vshrl.u32 %v278, 7
    %v280 = vsub.s32 %v277, %v279
    %v281 = vrot.slane %v267, %v280
    %v282 = vcombine.high %v274, %v274
    %v283 = vcombine.high %v281, %v281
    %v285 = vunpack.c.l.s4 1966171168
    %v286 = vunpack.c.0.s8 %v285
    %v287 = vlaneseq
    %v288 = vshrl.u32 %v287, 7
    %v289 = vsub.s32 %v286, %v288
    %v290 = vrot.slane %v274, %v289
    %v292 = vunpack.c.l.s4 1966171168
    %v293 = vunpack.c.0.s8 %v292
    %v294 = vlaneseq
    %v295 = vshrl.u32 %v294, 7
    %v296 = vsub.s32 %v293, %v295
    %v297 = vrot.slane %v281, %v296
    %v299 = vunpack.c.l.s4 1966171168
    %v300 = vunpack.c.0.s8 %v299
    %v301 = vlaneseq
    %v302 = vshrl.u32 %v301, 7
    %v303 = vsub.s32 %v300, %v302
    %v304 = vrot.slane %v282, %v303
    %v306 = vunpack.c.l.s4 1966171168
    %v307 = vunpack.c.0.s8 %v306
    %v308 = vlaneseq
    %v309 = vshrl.u32 %v308, 7
    %v310 = vsub.s32 %v307, %v309
    %v311 = vrot.slane %v283, %v310
    %v312 = vcombine.high %v290, %v290
    %v313 = vcombine.high %v297, %v297
    %v314 = vcombine.high %v304, %v304
    %v315 = vcombine.high %v311, %v311
    %v316 = vcombine.high %v108, %v108
    %v318 = vunpack.c.l.s4 1966171168
    %v319 = vunpack.c.0.s8 %v318
    %v320 = vlaneseq
    %v321 = vshrl.u32 %v320, 7
    %v322 = vsub.s32 %v319, %v321
    %v323 = vrot.slane %v108, %v322
    %v325 = vunpack.c.l.s4 1966171168
    %v326 = vunpack.c.0.s8 %v325
    %v327 = vlaneseq
    %v328 = vshrl.u32 %v327, 7
    %v329 = vsub.s32 %v326, %v328
    %v330 = vrot.slane %v316, %v329
    %v331 = vcombine.high %v323, %v323
    %v332 = vcombine.high %v330, %v330
    %v334 = vunpack.c.l.s4 1966171168
    %v335 = vunpack.c.0.s8 %v334
    %v336 = vlaneseq
    %v337 = vshrl.u32 %v336, 7
    %v338 = vsub.s32 %v335, %v337
    %v339 = vrot.slane %v323, %v338
    %v341 = vunpack.c.l.s4 1966171168
    %v342 = vunpack.c.0.s8 %v341
    %v343 = vlaneseq
    %v344 = vshrl.u32 %v343, 7
    %v345 = vsub.s32 %v342, %v344
    %v346 = vrot.slane %v330, %v345
    %v348 = vunpack.c.l.s4 1966171168
    %v349 = vunpack.c.0.s8 %v348
    %v350 = vlaneseq
    %v351 = vshrl.u32 %v350, 7
    %v352 = vsub.s32 %v349, %v351
    %v353 = vrot.slane %v331, %v352
    %v355 = vunpack.c.l.s4 1966171168
    %v356 = vunpack.c.0.s8 %v355
    %v357 = vlaneseq
    %v358 = vshrl.u32 %v357, 7
    %v359 = vsub.s32 %v356, %v358
    %v360 = vrot.slane %v332, %v359
    %v361 = vcombine.high %v339, %v339
    %v362 = vcombine.high %v346, %v346
    %v363 = vcombine.high %v353, %v353
    %v364 = vcombine.high %v360, %v360
    %v365 = vcombine.high %v109, %v109
    %v367 = vunpack.c.l.s4 1966171168
    %v368 = vunpack.c.0.s8 %v367
    %v369 = vlaneseq
    %v370 = vshrl.u32 %v369, 7
    %v371 = vsub.s32 %v368, %v370
    %v372 = vrot.slane %v109, %v371
    %v374 = vunpack.c.l.s4 1966171168
    %v375 = vunpack.c.0.s8 %v374
    %v376 = vlaneseq
    %v377 = vshrl.u32 %v376, 7
    %v378 = vsub.s32 %v375, %v377
    %v379 = vrot.slane %v365, %v378
    %v380 = vcombine.high %v372, %v372
    %v381 = vcombine.high %v379, %v379
    %v383 = vunpack.c.l.s4 1966171168
    %v384 = vunpack.c.0.s8 %v383
    %v385 = vlaneseq
    %v386 = vshrl.u32 %v385, 7
    %v387 = vsub.s32 %v384, %v386
    %v388 = vrot.slane %v372, %v387
    %v390 = vunpack.c.l.s4 1966171168
    %v391 = vunpack.c.0.s8 %v390
    %v392 = vlaneseq
    %v393 = vshrl.u32 %v392, 7
    %v394 = vsub.s32 %v391, %v393
    %v395 = vrot.slane %v379, %v394
    %v397 = vunpack.c.l.s4 1966171168
    %v398 = vunpack.c.0.s8 %v397
    %v399 = vlaneseq
    %v400 = vshrl.u32 %v399, 7
    %v401 = vsub.s32 %v398, %v400
    %v402 = vrot.slane %v380, %v401
    %v404 = vunpack.c.l.s4 1966171168
    %v405 = vunpack.c.0.s8 %v404
    %v406 = vlaneseq
    %v407 = vshrl.u32 %v406, 7
    %v408 = vsub.s32 %v405, %v407
    %v409 = vrot.slane %v381, %v408
    %v410 = vcombine.high %v388, %v388
    %v411 = vcombine.high %v395, %v395
    %v412 = vcombine.high %v402, %v402
    %v413 = vcombine.high %v409, %v409
    %v414 = vcombine.high %v110, %v110
    %v416 = vunpack.c.l.s4 1966171168
    %v417 = vunpack.c.0.s8 %v416
    %v418 = vlaneseq
    %v419 = vshrl.u32 %v418, 7
    %v420 = vsub.s32 %v417, %v419
    %v421 = vrot.slane %v110, %v420
    %v423 = vunpack.c.l.s4 1966171168
    %v424 = vunpack.c.0.s8 %v423
    %v425 = vlaneseq
    %v426 = vshrl.u32 %v425, 7
    %v427 = vsub.s32 %v424, %v426
    %v428 = vrot.slane %v414, %v427
    %v429 = vcombine.high %v421, %v421
    %v430 = vcombine.high %v428, %v428
    %v432 = vunpack.c.l.s4 1966171168
    %v433 = vunpack.c.0.s8 %v432
    %v434 = vlaneseq
    %v435 = vshrl.u32 %v434, 7
    %v436 = vsub.s32 %v433, %v435
    %v437 = vrot.slane %v421, %v436
    %v439 = vunpack.c.l.s4 1966171168
    %v440 = vunpack.c.0.s8 %v439
    %v441 = vlaneseq
    %v442 = vshrl.u32 %v441, 7
    %v443 = vsub.s32 %v440, %v442
    %v444 = vrot.slane %v428, %v443
    %v446 = vunpack.c.l.s4 1966171168
    %v447 = vunpack.c.0.s8 %v446
    %v448 = vlaneseq
    %v449 = vshrl.u32 %v448, 7
    %v450 = vsub.s32 %v447, %v449
    %v451 = vrot.slane %v429, %v450
    %v453 = vunpack.c.l.s4 1966171168
    %v454 = vunpack.c.0.s8 %v453
    %v455 = vlaneseq
    %v456 = vshrl.u32 %v455, 7
    %v457 = vsub.s32 %v454, %v456
    %v458 = vrot.slane %v430, %v457
    %v459 = vcombine.high %v437, %v437
    %v460 = vcombine.high %v444, %v444
    %v461 = vcombine.high %v451, %v451
    %v462 = vcombine.high %v458, %v458
    %v463 = vcombine.high %v111, %v111
    %v465 = vunpack.c.l.s4 1966171168
    %v466 = vunpack.c.0.s8 %v465
    %v467 = vlaneseq
    %v468 = vshrl.u32 %v467, 7
    %v469 = vsub.s32 %v466, %v468
    %v470 = vrot.slane %v111, %v469
    %v472 = vunpack.c.l.s4 1966171168
    %v473 = vunpack.c.0.s8 %v472
    %v474 = vlaneseq
    %v475 = vshrl.u32 %v474, 7
    %v476 = vsub.s32 %v473, %v475
    %v477 = vrot.slane %v463, %v476
    %v478 = vcombine.high %v470, %v470
    %v479 = vcombine.high %v477, %v477
    %v481 = vunpack.c.l.s4 1966171168
    %v482 = vunpack.c.0.s8 %v481
    %v483 = vlaneseq
    %v484 = vshrl.u32 %v483, 7
    %v485 = vsub.s32 %v482, %v484
    %v486 = vrot.slane %v470, %v485
    %v488 = vunpack.c.l.s4 1966171168
    %v489 = vunpack.c.0.s8 %v488
    %v490 = vlaneseq
    %v491 = vshrl.u32 %v490, 7
    %v492 = vsub.s32 %v489, %v491
    %v493 = vrot.slane %v477, %v492
    %v495 = vunpack.c.l.s4 1966171168
    %v496 = vunpack.c.0.s8 %v495
    %v497 = vlaneseq
    %v498 = vshrl.u32 %v497, 7
    %v499 = vsub.s32 %v496, %v498
    %v500 = vrot.slane %v478, %v499
    %v502 = vunpack.c.l.s4 1966171168
    %v503 = vunpack.c.0.s8 %v502
    %v504 = vlaneseq
    %v505 = vshrl.u32 %v504, 7
    %v506 = vsub.s32 %v503, %v505
    %v507 = vrot.slane %v479, %v506
    %v508 = vcombine.high %v486, %v486
    %v509 = vcombine.high %v493, %v493
    %v510 = vcombine.high %v500, %v500
    %v511 = vcombine.high %v507, %v507
    %v512 = vlaneseq
    %v513 = vshrl.u32 %v512, 7
    %v514 = vsub.s32 0, %v513
    %v515 = vrot.slane %v143, %v514
    %v516 = vlaneseq
    %v517 = vshrl.u32 %v516, 7
    %v518 = vsub.s32 0, %v517
    %v519 = vrot.slane %v157, %v518
    %v520 = vlaneseq
    %v521 = vshrl.u32 %v520, 7
    %v522 = vsub.s32 0, %v521
    %v523 = vrot.slane %v165, %v522
    %v524 = vlaneseq
    %v525 = vshrl.u32 %v524, 7
    %v526 = vsub.s32 0, %v525
    %v527 = vrot.slane %v167, %v526
    %v528 = vlaneseq
    %v529 = vshrl.u32 %v528, 7
    %v530 = vsub.s32 0, %v529
    %v531 = vrot.slane %v150, %v530
    %v532 = vlaneseq
    %v533 = vshrl.u32 %v532, 7
    %v534 = vsub.s32 0, %v533
    %v535 = vrot.slane %v164, %v534
    %v536 = vlaneseq
    %v537 = vshrl.u32 %v536, 7
    %v538 = vsub.s32 0, %v537
    %v539 = vrot.slane %v166, %v538
    %v540 = vlaneseq
    %v541 = vshrl.u32 %v540, 7
    %v542 = vsub.s32 0, %v541
    %v543 = vrot.slane %v168, %v542
    %v544 = vlaneseq
    %v545 = vshrl.u32 %v544, 7
    %v546 = vsub.s32 0, %v545
    %v547 = vrot.slane %v192, %v546
    %v548 = vlaneseq
    %v549 = vshrl.u32 %v548, 7
    %v550 = vsub.s32 0, %v549
    %v551 = vrot.slane %v206, %v550
    %v552 = vlaneseq
    %v553 = vshrl.u32 %v552, 7
    %v554 = vsub.s32 0, %v553
    %v555 = vrot.slane %v214, %v554
    %v556 = vlaneseq
    %v557 = vshrl.u32 %v556, 7
    %v558 = vsub.s32 0, %v557
    %v559 = vrot.slane %v216, %v558
    %v560 = vlaneseq
    %v561 = vshrl.u32 %v560, 7
    %v562 = vsub.s32 0, %v561
    %v563 = vrot.slane %v199, %v562
    %v564 = vlaneseq
    %v565 = vshrl.u32 %v564, 7
    %v566 = vsub.s32 0, %v565
    %v567 = vrot.slane %v213, %v566
    %v568 = vlaneseq
    %v569 = vshrl.u32 %v568, 7
    %v570 = vsub.s32 0, %v569
    %v571 = vrot.slane %v215, %v570
    %v572 = vlaneseq
    %v573 = vshrl.u32 %v572, 7
    %v574 = vsub.s32 0, %v573
    %v575 = vrot.slane %v217, %v574
    %v576 = vlaneseq
    %v577 = vshrl.u32 %v576, 7
    %v578 = vsub.s32 0, %v577
    %v579 = vrot.slane %v241, %v578
    %v580 = vlaneseq
    %v581 = vshrl.u32 %v580, 7
    %v582 = vsub.s32 0, %v581
    %v583 = vrot.slane %v255, %v582
    %v584 = vlaneseq
    %v585 = vshrl.u32 %v584, 7
    %v586 = vsub.s32 0, %v585
    %v587 = vrot.slane %v263, %v586
    %v588 = vlaneseq
    %v589 = vshrl.u32 %v588, 7
    %v590 = vsub.s32 0, %v589
    %v591 = vrot.slane %v265, %v590
    %v592 = vlaneseq
    %v593 = vshrl.u32 %v592, 7
    %v594 = vsub.s32 0, %v593
    %v595 = vrot.slane %v248, %v594
    %v596 = vlaneseq
    %v597 = vshrl.u32 %v596, 7
    %v598 = vsub.s32 0, %v597
    %v599 = vrot.slane %v262, %v598
    %v600 = vlaneseq
    %v601 = vshrl.u32 %v600, 7
    %v602 = vsub.s32 0, %v601
    %v603 = vrot.slane %v264, %v602
    %v604 = vlaneseq
    %v605 = vshrl.u32 %v604, 7
    %v606 = vsub.s32 0, %v605
    %v607 = vrot.slane %v266, %v606
    %v608 = vlaneseq
    %v609 = vshrl.u32 %v608, 7
    %v610 = vsub.s32 0, %v609
    %v611 = vrot.slane %v290, %v610
    %v612 = vlaneseq
    %v613 = vshrl.u32 %v612, 7
    %v614 = vsub.s32 0, %v613
    %v615 = vrot.slane %v304, %v614
    %v616 = vlaneseq
    %v617 = vshrl.u32 %v616, 7
    %v618 = vsub.s32 0, %v617
    %v619 = vrot.slane %v312, %v618
    %v620 = vlaneseq
    %v621 = vshrl.u32 %v620, 7
    %v622 = vsub.s32 0, %v621
    %v623 = vrot.slane %v314, %v622
    %v624 = vlaneseq
    %v625 = vshrl.u32 %v624, 7
    %v626 = vsub.s32 0, %v625
    %v627 = vrot.slane %v297, %v626
    %v628 = vlaneseq
    %v629 = vshrl.u32 %v628, 7
    %v630 = vsub.s32 0, %v629
    %v631 = vrot.slane %v311, %v630
    %v632 = vlaneseq
    %v633 = vshrl.u32 %v632, 7
    %v634 = vsub.s32 0, %v633
    %v635 = vrot.slane %v313, %v634
    %v636 = vlaneseq
    %v637 = vshrl.u32 %v636, 7
    %v638 = vsub.s32 0, %v637
    %v639 = vrot.slane %v315, %v638
    %v640 = vlaneseq
    %v641 = vshrl.u32 %v640, 7
    %v642 = vsub.s32 0, %v641
    %v643 = vrot.slane %v339, %v642
    %v644 = vlaneseq
    %v645 = vshrl.u32 %v644, 7
    %v646 = vsub.s32 0, %v645
    %v647 = vrot.slane %v353, %v646
    %v648 = vlaneseq
    %v649 = vshrl.u32 %v648, 7
    %v650 = vsub.s32 0, %v649
    %v651 = vrot.slane %v361, %v650
    %v652 = vlaneseq
    %v653 = vshrl.u32 %v652, 7
    %v654 = vsub.s32 0, %v653
    %v655 = vrot.slane %v363, %v654
    %v656 = vlaneseq
    %v657 = vshrl.u32 %v656, 7
    %v658 = vsub.s32 0, %v657
    %v659 = vrot.slane %v346, %v658
    %v660 = vlaneseq
    %v661 = vshrl.u32 %v660, 7
    %v662 = vsub.s32 0, %v661
    %v663 = vrot.slane %v360, %v662
    %v664 = vlaneseq
    %v665 = vshrl.u32 %v664, 7
    %v666 = vsub.s32 0, %v665
    %v667 = vrot.slane %v362, %v666
    %v668 = vlaneseq
    %v669 = vshrl.u32 %v668, 7
    %v670 = vsub.s32 0, %v669
    %v671 = vrot.slane %v364, %v670
    %v672 = vlaneseq
    %v673 = vshrl.u32 %v672, 7
    %v674 = vsub.s32 0, %v673
    %v675 = vrot.slane %v388, %v674
    %v676 = vlaneseq
    %v677 = vshrl.u32 %v676, 7
    %v678 = vsub.s32 0, %v677
    %v679 = vrot.slane %v402, %v678
    %v680 = vlaneseq
    %v681 = vshrl.u32 %v680, 7
    %v682 = vsub.s32 0, %v681
    %v683 = vrot.slane %v410, %v682
    %v684 = vlaneseq
    %v685 = vshrl.u32 %v684, 7
    %v686 = vsub.s32 0, %v685
    %v687 = vrot.slane %v412, %v686
    %v688 = vlaneseq
    %v689 = vshrl.u32 %v688, 7
    %v690 = vsub.s32 0, %v689
    %v691 = vrot.slane %v395, %v690
    %v692 = vlaneseq
    %v693 = vshrl.u32 %v692, 7
    %v694 = vsub.s32 0, %v693
    %v695 = vrot.slane %v409, %v694
    %v696 = vlaneseq
    %v697 = vshrl.u32 %v696, 7
    %v698 = vsub.s32 0, %v697
    %v699 = vrot.slane %v411, %v698
    %v700 = vlaneseq
    %v701 = vshrl.u32 %v700, 7
    %v702 = vsub.s32 0, %v701
    %v703 = vrot.slane %v413, %v702
    %v704 = vlaneseq
    %v705 = vshrl.u32 %v704, 7
    %v706 = vsub.s32 0, %v705
    %v707 = vrot.slane %v437, %v706
    %v708 = vlaneseq
    %v709 = vshrl.u32 %v708, 7
    %v710 = vsub.s32 0, %v709
    %v711 = vrot.slane %v451, %v710
    %v712 = vlaneseq
    %v713 = vshrl.u32 %v712, 7
    %v714 = vsub.s32 0, %v713
    %v715 = vrot.slane %v459, %v714
    %v716 = vlaneseq
    %v717 = vshrl.u32 %v716, 7
    %v718 = vsub.s32 0, %v717
    %v719 = vrot.slane %v461, %v718
    %v720 = vlaneseq
    %v721 = vshrl.u32 %v720, 7
    %v722 = vsub.s32 0, %v721
    %v723 = vrot.slane %v444, %v722
    %v724 = vlaneseq
    %v725 = vshrl.u32 %v724, 7
    %v726 = vsub.s32 0, %v725
    %v727 = vrot.slane %v458, %v726
    %v728 = vlaneseq
    %v729 = vshrl.u32 %v728, 7
    %v730 = vsub.s32 0, %v729
    %v731 = vrot.slane %v460, %v730
    %v732 = vlaneseq
    %v733 = vshrl.u32 %v732, 7
    %v734 = vsub.s32 0, %v733
    %v735 = vrot.slane %v462, %v734
    %v736 = vlaneseq
    %v737 = vshrl.u32 %v736, 7
    %v738 = vsub.s32 0, %v737
    %v739 = vrot.slane %v486, %v738
    %v740 = vlaneseq
    %v741 = vshrl.u32 %v740, 7
    %v742 = vsub.s32 0, %v741
    %v743 = vrot.slane %v500, %v742
    %v744 = vlaneseq
    %v745 = vshrl.u32 %v744, 7
    %v746 = vsub.s32 0, %v745
    %v747 = vrot.slane %v508, %v746
    %v748 = vlaneseq
    %v749 = vshrl.u32 %v748, 7
    %v750 = vsub.s32 0, %v749
    %v751 = vrot.slane %v510, %v750
    %v752 = vlaneseq
    %v753 = vshrl.u32 %v752, 7
    %v754 = vsub.s32 0, %v753
    %v755 = vrot.slane %v493, %v754
    %v756 = vlaneseq
    %v757 = vshrl.u32 %v756, 7
    %v758 = vsub.s32 0, %v757
    %v759 = vrot.slane %v507, %v758
    %v760 = vlaneseq
    %v761 = vshrl.u32 %v760, 7
    %v762 = vsub.s32 0, %v761
    %v763 = vrot.slane %v509, %v762
    %v764 = vlaneseq
    %v765 = vshrl.u32 %v764, 7
    %v766 = vsub.s32 0, %v765
    %v767 = vrot.slane %v511, %v766
    %v832 = vadd.f32 %v40, %v515
    %v833 = vadd.f32 %v41, %v519
    %v834 = vadd.f32 %v42, %v523
    %v835 = vadd.f32 %v43, %v527
    %v836 = vadd.f32 %v44, %v531
    %v837 = vadd.f32 %v45, %v535
    %v838 = vadd.f32 %v46, %v539
    %v839 = vadd.f32 %v47, %v543
    %v840 = vadd.f32 %v48, %v547
    %v841 = vadd.f32 %v49, %v551
    %v842 = vadd.f32 %v50, %v555
    %v843 = vadd.f32 %v51, %v559
    %v844 = vadd.f32 %v52, %v563
    %v845 = vadd.f32 %v53, %v567
    %v846 = vadd.f32 %v54, %v571
    %v847 = vadd.f32 %v55, %v575
    %v848 = vadd.f32 %v56, %v579
    %v849 = vadd.f32 %v57, %v583
    %v850 = vadd.f32 %v58, %v587
    %v851 = vadd.f32 %v59, %v591
    %v852 = vadd.f32 %v60, %v595
    %v853 = vadd.f32 %v61, %v599
    %v854 = vadd.f32 %v62, %v603
    %v855 = vadd.f32 %v63, %v607
    %v856 = vadd.f32 %v64, %v611
    %v857 = vadd.f32 %v65, %v615
    %v858 = vadd.f32 %v66, %v619
    %v859 = vadd.f32 %v67, %v623
    %v860 = vadd.f32 %v68, %v627
    %v861 = vadd.f32 %v69, %v631
    %v862 = vadd.f32 %v70, %v635
    %v863 = vadd.f32 %v71, %v639
    %v864 = vadd.f32 %v72, %v643
    %v865 = vadd.f32 %v73, %v647
    %v866 = vadd.f32 %v74, %v651
    %v867 = vadd.f32 %v75, %v655
    %v868 = vadd.f32 %v76, %v659
    %v869 = vadd.f32 %v77, %v663
    %v870 = vadd.f32 %v78, %v667
    %v871 = vadd.f32 %v79, %v671
    %v872 = vadd.f32 %v80, %v675
    %v873 = vadd.f32 %v81, %v679
    %v874 = vadd.f32 %v82, %v683
    %v875 = vadd.f32 %v83, %v687
    %v876 = vadd.f32 %v84, %v691
    %v877 = vadd.f32 %v85, %v695
    %v878 = vadd.f32 %v86, %v699
    %v879 = vadd.f32 %v87, %v703
    %v880 = vadd.f32 %v88, %v707
    %v881 = vadd.f32 %v89, %v711
    %v882 = vadd.f32 %v90, %v715
    %v883 = vadd.f32 %v91, %v719
    %v884 = vadd.f32 %v92, %v723
    %v885 = vadd.f32 %v93, %v727
    %v886 = vadd.f32 %v94, %v731
    %v887 = vadd.f32 %v95, %v735
    %v888 = vadd.f32 %v96, %v739
    %v889 = vadd.f32 %v97, %v743
    %v890 = vadd.f32 %v98, %v747
    %v891 = vadd.f32 %v99, %v751
    %v892 = vadd.f32 %v100, %v755
    %v893 = vadd.f32 %v101, %v759
    %v894 = vadd.f32 %v102, %v763
    %v895 = vadd.f32 %v103, %v767
    %896 = vst [vmem:[#allocation7] sm:$0xff] %v832
    %897 = vst [vmem:[#allocation7 + $0x8] sm:$0xff] %v833
    %898 = vst [vmem:[#allocation7 + $0x10] sm:$0xff] %v834
    %899 = vst [vmem:[#allocation7 + $0x18] sm:$0xff] %v835
    %900 = vst [vmem:[#allocation7 + $0x20] sm:$0xff] %v836
    %901 = vst [vmem:[#allocation7 + $0x28] sm:$0xff] %v837
    %902 = vst [vmem:[#allocation7 + $0x30] sm:$0xff] %v838
    %903 = vst [vmem:[#allocation7 + $0x38] sm:$0xff] %v839
    %904 = vst [vmem:[#allocation7 + $0x40] sm:$0xff] %v840
    %905 = vst [vmem:[#allocation7 + $0x48] sm:$0xff] %v841
    %906 = vst [vmem:[#allocation7 + $0x50] sm:$0xff] %v842
    %907 = vst [vmem:[#allocation7 + $0x58] sm:$0xff] %v843
    %908 = vst [vmem:[#allocation7 + $0x60] sm:$0xff] %v844
    %909 = vst [vmem:[#allocation7 + $0x68] sm:$0xff] %v845
    %910 = vst [vmem:[#allocation7 + $0x70] sm:$0xff] %v846
    %911 = vst [vmem:[#allocation7 + $0x78] sm:$0xff] %v847
    %912 = vst [vmem:[#allocation7 + $0x80] sm:$0xff] %v848
    %913 = vst [vmem:[#allocation7 + $0x88] sm:$0xff] %v849
    %914 = vst [vmem:[#allocation7 + $0x90] sm:$0xff] %v850
    %915 = vst [vmem:[#allocation7 + $0x98] sm:$0xff] %v851
    %916 = vst [vmem:[#allocation7 + $0xa0] sm:$0xff] %v852
    %917 = vst [vmem:[#allocation7 + $0xa8] sm:$0xff] %v853
    %918 = vst [vmem:[#allocation7 + $0xb0] sm:$0xff] %v854
    %919 = vst [vmem:[#allocation7 + $0xb8] sm:$0xff] %v855
    %920 = vst [vmem:[#allocation7 + $0xc0] sm:$0xff] %v856
    %921 = vst [vmem:[#allocation7 + $0xc8] sm:$0xff] %v857
    %922 = vst [vmem:[#allocation7 + $0xd0] sm:$0xff] %v858
    %923 = vst [vmem:[#allocation7 + $0xd8] sm:$0xff] %v859
    %924 = vst [vmem:[#allocation7 + $0xe0] sm:$0xff] %v860
    %925 = vst [vmem:[#allocation7 + $0xe8] sm:$0xff] %v861
    %926 = vst [vmem:[#allocation7 + $0xf0] sm:$0xff] %v862
    %927 = vst [vmem:[#allocation7 + $0xf8] sm:$0xff] %v863
    %928 = vst [vmem:[#allocation7 + $0x100] sm:$0xff] %v864
    %929 = vst [vmem:[#allocation7 + $0x108] sm:$0xff] %v865
    %930 = vst [vmem:[#allocation7 + $0x110] sm:$0xff] %v866
    %931 = vst [vmem:[#allocation7 + $0x118] sm:$0xff] %v867
    %932 = vst [vmem:[#allocation7 + $0x120] sm:$0xff] %v868
    %933 = vst [vmem:[#allocation7 + $0x128] sm:$0xff] %v869
    %934 = vst [vmem:[#allocation7 + $0x130] sm:$0xff] %v870
    %935 = vst [vmem:[#allocation7 + $0x138] sm:$0xff] %v871
    %936 = vst [vmem:[#allocation7 + $0x140] sm:$0xff] %v872
    %937 = vst [vmem:[#allocation7 + $0x148] sm:$0xff] %v873
    %938 = vst [vmem:[#allocation7 + $0x150] sm:$0xff] %v874
    %939 = vst [vmem:[#allocation7 + $0x158] sm:$0xff] %v875
    %940 = vst [vmem:[#allocation7 + $0x160] sm:$0xff] %v876
    %941 = vst [vmem:[#allocation7 + $0x168] sm:$0xff] %v877
    %942 = vst [vmem:[#allocation7 + $0x170] sm:$0xff] %v878
    %943 = vst [vmem:[#allocation7 + $0x178] sm:$0xff] %v879
    %944 = vst [vmem:[#allocation7 + $0x180] sm:$0xff] %v880
    %945 = vst [vmem:[#allocation7 + $0x188] sm:$0xff] %v881
    %946 = vst [vmem:[#allocation7 + $0x190] sm:$0xff] %v882
    %947 = vst [vmem:[#allocation7 + $0x198] sm:$0xff] %v883
    %948 = vst [vmem:[#allocation7 + $0x1a0] sm:$0xff] %v884
    %949 = vst [vmem:[#allocation7 + $0x1a8] sm:$0xff] %v885
    %950 = vst [vmem:[#allocation7 + $0x1b0] sm:$0xff] %v886
    %951 = vst [vmem:[#allocation7 + $0x1b8] sm:$0xff] %v887
    %952 = vst [vmem:[#allocation7 + $0x1c0] sm:$0xff] %v888
    %953 = vst [vmem:[#allocation7 + $0x1c8] sm:$0xff] %v889
    %954 = vst [vmem:[#allocation7 + $0x1d0] sm:$0xff] %v890
    %955 = vst [vmem:[#allocation7 + $0x1d8] sm:$0xff] %v891
    %956 = vst [vmem:[#allocation7 + $0x1e0] sm:$0xff] %v892
    %957 = vst [vmem:[#allocation7 + $0x1e8] sm:$0xff] %v893
    %958 = vst [vmem:[#allocation7 + $0x1f0] sm:$0xff] %v894
    %959 = vst [vmem:[#allocation7 + $0x1f8] sm:$0xff] %v895
    // Predicated region
    $region18: #{tpu_custom_call.1} parent=1 // pred_check
      _
    $region19: #{tpu_custom_call.1} parent=1 // pred_check_branch
      %961 = sbr.rel (0) target = $region21
    $region20: #{tpu_custom_call.1} parent=1 // pred_region
      %s963 = ssub.s32 8192, 8192
      %964 = vsyncadd [#allocation4], %s963
      %s965 = sshll.u32 [#allocation7], 4
      %s966 = int_to_ptr.vmem [resolvable:$true] %s965
      %971 = dma.vmem_to_hbm [thread:$0]  %s966, 8192, %s2, [#allocation4], 128, 128, 8
    $region21: #{tpu_custom_call.1} parent=1 // pred_fallthru
      _
    // Predicated region
    $region22: #{tpu_custom_call.1} parent=1 // pred_check
      _
    $region23: #{tpu_custom_call.1} parent=1 // pred_check_branch
      %973 = sbr.rel (0) target = $region25
    $region24: #{tpu_custom_call.1} parent=1 // pred_region
      %974 = dma.done [#allocation4], 8192
    $region25: #{tpu_custom_call.1} parent=1 // pred_fallthru
      _
    %975 = vsyncpa [#allocation3], 1
    %976 = vsyncpa [#allocation6], 1
    %977 = vsyncpa [#allocation4], 1

</llo_original>
